<compile_context>
chip_gen: v7x
topology: tpu7x:2x2x1
jax: 0.10.0
libtpu: 0.0.40
codegen_flags: <defaults>
</compile_context>

<pallas_src>
import jax
import jax.numpy as jnp
from jax import lax
from jax.experimental import pallas as pl
from jax.experimental.pallas import tpu as pltpu


def _linear_double_cat_kernel(x_ref, w_ref, b_ref, o_ref):
    B = x_ref.shape[0]
    OUT = w_ref.shape[0]
    # Linear: y = x @ W.T + b, contracting last dims of x and W directly
    # (no in-kernel transpose); f32 accumulation on the MXU.
    y = lax.dot_general(
        x_ref[...], w_ref[...],
        dimension_numbers=(((1,), (1,)), ((), ())),
        preferred_element_type=jnp.float32,
    )
    y = (y + b_ref[...]).astype(o_ref.dtype)      # b_ref is (1, OUT), broadcasts
    # cat([y, y], dim=0) then cat([., .], dim=1): four static slice stores.
    o_ref[0:B, 0:OUT] = y
    o_ref[0:B, OUT:2 * OUT] = y
    o_ref[B:2 * B, 0:OUT] = y
    o_ref[B:2 * B, OUT:2 * OUT] = y


def model_forward(x, w, b):
    B, IN = x.shape
    OUT = w.shape[0]
    b2d = b.reshape(1, OUT)
    out_shape = jax.ShapeDtypeStruct((2 * B, 2 * OUT), x.dtype)

    bytes_accessed = (x.size + w.size + b2d.size) * x.dtype.itemsize \
        + (2 * B) * (2 * OUT) * x.dtype.itemsize

    return pl.pallas_call(
        _linear_double_cat_kernel,
        out_shape=out_shape,
        in_specs=[
            pl.BlockSpec(memory_space=pltpu.MemorySpace.VMEM),
            pl.BlockSpec(memory_space=pltpu.MemorySpace.VMEM),
            pl.BlockSpec(memory_space=pltpu.MemorySpace.VMEM),
        ],
        out_specs=pl.BlockSpec(memory_space=pltpu.MemorySpace.VMEM),
        cost_estimate=pl.CostEstimate(
            flops=2 * B * IN * OUT,
            transcendentals=0,
            bytes_accessed=bytes_accessed,
        ),
    )(x, w, b2d)


if __name__ == "__main__":
    key = jax.random.PRNGKey(0)
    kx, kw, kb = jax.random.split(key, 3)

    # Input: x = torch.randn((2, 4))
    x = jax.random.normal(kx, (2, 4), dtype=jnp.float32)

    # Deterministic Linear(4, 4) parameters (PyTorch-style uniform init range)
    bound = 1.0 / jnp.sqrt(4.0)
    w = jax.random.uniform(kw, (4, 4), dtype=jnp.float32, minval=-bound, maxval=bound)
    b = jax.random.uniform(kb, (4,), dtype=jnp.float32, minval=-bound, maxval=bound)

    out = model_forward(x, w, b)
    out = jax.block_until_ready(out)

    # Pure-JAX reference check
    y_ref = x @ w.T + b
    y_ref = jnp.concatenate([y_ref, y_ref], axis=0)
    y_ref = jnp.concatenate([y_ref, y_ref], axis=1)
    assert out.shape == (4, 8), out.shape
    assert jnp.allclose(out, y_ref, atol=1e-5, rtol=1e-5)

    print("KERNEL_OK")
</pallas_src>

<mosaic_0001>
module attributes {stable_mosaic.version = 11 : i64} {
  func.func @_linear_double_cat_kernel(%arg0: memref<2x4xf32, #tpu.memory_space<vmem>>, %arg1: memref<4x4xf32, #tpu.memory_space<vmem>>, %arg2: memref<1x4xf32, #tpu.memory_space<vmem>>, %arg3: memref<4x8xf32, #tpu.memory_space<vmem>>) attributes {dimension_semantics = [], scalar_prefetch = 0 : i64, scratch_operands = 0 : i64, tpu.core_type = #tpu.core_type<tc>} {
    %c0 = arith.constant 0 : index
    %c0_0 = arith.constant 0 : index
    %0 = vector.load %arg0[%c0, %c0_0] : memref<2x4xf32, #tpu.memory_space<vmem>>, vector<2x4xf32>
    %c0_1 = arith.constant 0 : index
    %c0_2 = arith.constant 0 : index
    %1 = vector.load %arg1[%c0_1, %c0_2] : memref<4x4xf32, #tpu.memory_space<vmem>>, vector<4x4xf32>
    %cst = arith.constant dense<0.000000e+00> : vector<2x4xf32>
    %2 = tpu.matmul %0, %1, %cst {dimension_numbers = #tpu.dot_dimension_numbers<[1], [1], [0], [0], [0, 0, 1, 0], [], []>} : vector<2x4xf32>, vector<4x4xf32>, vector<2x4xf32> -> vector<2x4xf32>
    %c0_3 = arith.constant 0 : index
    %c0_4 = arith.constant 0 : index
    %3 = vector.load %arg2[%c0_3, %c0_4] : memref<1x4xf32, #tpu.memory_space<vmem>>, vector<1x4xf32>
    %4 = vector.broadcast %3 : vector<1x4xf32> to vector<2x4xf32>
    %5 = arith.addf %2, %4 : vector<2x4xf32>
    %c0_5 = arith.constant 0 : index
    %c0_6 = arith.constant 0 : index
    %6 = vector.load %arg3[%c0_5, %c0_6] : memref<4x8xf32, #tpu.memory_space<vmem>>, vector<2x4xf32>
    tpu.vector_store %arg3[%c0_5, %c0_6], %5 {strides = array<i32>} : memref<4x8xf32, #tpu.memory_space<vmem>>, vector<2x4xf32>,
    %c0_7 = arith.constant 0 : index
    %c4 = arith.constant 4 : index
    %7 = vector.load %arg3[%c0_7, %c4] : memref<4x8xf32, #tpu.memory_space<vmem>>, vector<2x4xf32>
    tpu.vector_store %arg3[%c0_7, %c4], %5 {strides = array<i32>} : memref<4x8xf32, #tpu.memory_space<vmem>>, vector<2x4xf32>,
    %c2 = arith.constant 2 : index
    %c0_8 = arith.constant 0 : index
    %8 = vector.load %arg3[%c2, %c0_8] : memref<4x8xf32, #tpu.memory_space<vmem>>, vector<2x4xf32>
    tpu.vector_store %arg3[%c2, %c0_8], %5 {strides = array<i32>} : memref<4x8xf32, #tpu.memory_space<vmem>>, vector<2x4xf32>,
    %c2_9 = arith.constant 2 : index
    %c4_10 = arith.constant 4 : index
    %9 = vector.load %arg3[%c2_9, %c4_10] : memref<4x8xf32, #tpu.memory_space<vmem>>, vector<2x4xf32>
    tpu.vector_store %arg3[%c2_9, %c4_10], %5 {strides = array<i32>} : memref<4x8xf32, #tpu.memory_space<vmem>>, vector<2x4xf32>,
    return
  }
}

</mosaic_0001>

<llo_original>
// kernel: tpu_custom_call.1
$region0: #{tpu_custom_call.1}
  #allocation0 [shape = 'u32[]', space=smem, size = 0x4, offset = 0x4, fixed_abs, tag = 'smem constant byte address 0x4 - core index']
  #allocation1 [shape = 'u32[144,128]{1,0:T(1,128)}', space=vmem, size = 0x12000, scoped, tag = 'internal scratch']
  %s0 = inlined_call_operand.hbm [shape: f32[2,4], index: 0, kind: input, shape index: {}]
  %s1 = inlined_call_operand.hbm [shape: f32[4,4], index: 1, kind: input, shape index: {}]
  %s2 = inlined_call_operand.vmem [shape: f32[1,4], index: 2, kind: input, shape index: {}]
  %s3 = inlined_call_operand.hbm [shape: f32[4,8], index: 3, kind: output, shape index: {}]
  %s4 = sld [smem:[#allocation0]]
  $region30: #{tpu_custom_call.1} parent=0
    _
  %s6 = ssub.s32 1, %s4
  %s7 = scalar_select 0, %s6, %s4
  $region1: #{tpu_custom_call.1} parent=0
    #allocation2 [shape = 'u8[1024]{0}', space=vmem, size = 0x400, scoped, tag = 'input window, operand 0, single buffered']
    #allocation3 [shape = 's32[1]{0}', space=sflag, size = 0x4, scoped, tag = 'scoped memory for tpu_custom_call.1']
    #allocation4 [shape = 's32[1]{0}', space=sflag, size = 0x4, scoped, tag = 'scoped memory for tpu_custom_call.1']
    #allocation5 [shape = 'u8[2048]{0}', space=vmem, size = 0x800, scoped, tag = 'input window, operand 1, single buffered']
    #allocation6 [shape = 's32[1]{0}', space=sflag, size = 0x4, scoped, tag = 'scoped memory for tpu_custom_call.1']
    #allocation7 [shape = 'u8[2048]{0}', space=vmem, size = 0x800, scoped, tag = 'output window, operand 0, single buffered']
    %8 = vsyncpa [#allocation3], 0
    %9 = vsyncpa [#allocation6], 0
    %10 = vsyncpa [#allocation4], 0
    // Predicated region
    $region2: #{tpu_custom_call.1} parent=1 // pred_check
      _
    $region3: #{tpu_custom_call.1} parent=1 // pred_check_branch
      %12 = sbr.rel (0) target = $region5
    $region4: #{tpu_custom_call.1} parent=1 // pred_region
      %s14 = ssub.s32 32, 32
      %15 = vsyncadd [#allocation3], %s14
      %s17 = sshll.u32 [#allocation2], 4
      %s18 = int_to_ptr.vmem [resolvable:$true] %s17
      %20 = dma.hbm_to_vmem [thread:$0]  %s0, 32, %s18, [#allocation3]
    $region5: #{tpu_custom_call.1} parent=1 // pred_fallthru
      _
    // Predicated region
    $region6: #{tpu_custom_call.1} parent=1 // pred_check
      _
    $region7: #{tpu_custom_call.1} parent=1 // pred_check_branch
      %22 = sbr.rel (0) target = $region9
    $region8: #{tpu_custom_call.1} parent=1 // pred_region
      %s24 = ssub.s32 64, 64
      %25 = vsyncadd [#allocation6], %s24
      %s27 = sshll.u32 [#allocation5], 4
      %s28 = int_to_ptr.vmem [resolvable:$true] %s27
      %30 = dma.hbm_to_vmem [thread:$0]  %s1, 64, %s28, [#allocation6]
    $region9: #{tpu_custom_call.1} parent=1 // pred_fallthru
      _
    // Predicated region
    $region10: #{tpu_custom_call.1} parent=1 // pred_check
      _
    $region11: #{tpu_custom_call.1} parent=1 // pred_check_branch
      %32 = sbr.rel (0) target = $region13
    $region12: #{tpu_custom_call.1} parent=1 // pred_region
      _
    $region13: #{tpu_custom_call.1} parent=1 // pred_fallthru
      _
    // Predicated region
    $region14: #{tpu_custom_call.1} parent=1 // pred_check
      _
    $region15: #{tpu_custom_call.1} parent=1 // pred_check_branch
      %34 = sbr.rel (0) target = $region17
    $region16: #{tpu_custom_call.1} parent=1 // pred_region
      %35 = dma.done [#allocation3], 32
    $region17: #{tpu_custom_call.1} parent=1 // pred_fallthru
      _
    // Predicated region
    $region18: #{tpu_custom_call.1} parent=1 // pred_check
      _
    $region19: #{tpu_custom_call.1} parent=1 // pred_check_branch
      %37 = sbr.rel (0) target = $region21
    $region20: #{tpu_custom_call.1} parent=1 // pred_region
      %38 = dma.done [#allocation6], 64
    $region21: #{tpu_custom_call.1} parent=1 // pred_fallthru
      _
    %v39 = vld [vmem:[#allocation2] sm:$0x3]
    %v40 = vld [vmem:[#allocation5] sm:$0xf]
    %v41 = vld [vmem:[%s2] sm:$0x1]
    %v43 = vlaneseq
    %v44 = vshrl.u32 %v43, 7
    %v45 = vsub.s32 0, %v44
    %v46 = vrot.slane %v41, %v45
    %vm48 = vcmask 31744
    %v50 = vsel %vm48, %v39, 0
    %v53 = vsel %vm48, %v40, 0
    %55 = vmatprep.subr.mxu0 0.0
    %56 = vmatpush1.xpose.msra.mxu0 %v53
    %57 = vmatprep.subr.mxu0 0.0
    %58 = vmatpush1.xpose.msra.mxu0 0.0
    %59 = vmatprep.subr.mxu0 0.0
    %60 = vmatpush1.xpose.msra.mxu0 0.0
    %61 = vmatprep.subr.mxu0 0.0
    %62 = vmatpush1.xpose.msra.mxu0 0.0
    %63 = vmatprep.subr.mxu0 0.0
    %64 = vmatpush1.xpose.msra.mxu0 0.0
    %65 = vmatprep.subr.mxu0 0.0
    %66 = vmatpush1.xpose.msra.mxu0 0.0
    %67 = vmatprep.subr.mxu0 0.0
    %68 = vmatpush1.xpose.msra.mxu0 0.0
    %69 = vmatprep.subr.mxu0 0.0
    %70 = vmatpush1.xpose.msra.mxu0 0.0
    %71 = vmatprep.subr.mxu0 0.0
    %72 = vmatpush1.xpose.msra.mxu0 0.0
    %73 = vmatprep.subr.mxu0 0.0
    %74 = vmatpush1.xpose.msra.mxu0 0.0
    %75 = vmatprep.subr.mxu0 0.0
    %76 = vmatpush1.xpose.msra.mxu0 0.0
    %77 = vmatprep.subr.mxu0 0.0
    %78 = vmatpush1.xpose.msra.mxu0 0.0
    %79 = vmatprep.subr.mxu0 0.0
    %80 = vmatpush1.xpose.msra.mxu0 0.0
    %81 = vmatprep.subr.mxu0 0.0
    %82 = vmatpush1.xpose.msra.mxu0 0.0
    %83 = vmatprep.subr.mxu0 0.0
    %84 = vmatpush1.xpose.msra.mxu0 0.0
    %85 = vmatprep.subr.mxu0 0.0
    %86 = vmatpush1.xpose.msra.mxu0 0.0
    %87 = vmatprep.subr.mxu0 0.0
    %88 = vmatpush1.xpose.msra.mxu0 0.0
    %89 = vmatprep.subr.mxu0 0.0
    %90 = vmatpush1.xpose.msra.mxu0 0.0
    %91 = vmatprep.subr.mxu0 0.0
    %92 = vmatpush1.xpose.msra.mxu0 0.0
    %93 = vmatprep.subr.mxu0 0.0
    %94 = vmatpush1.xpose.msra.mxu0 0.0
    %95 = vmatprep.subr.mxu0 0.0
    %96 = vmatpush1.xpose.msra.mxu0 0.0
    %97 = vmatprep.subr.mxu0 0.0
    %98 = vmatpush1.xpose.msra.mxu0 0.0
    %99 = vmatprep.subr.mxu0 0.0
    %100 = vmatpush1.xpose.msra.mxu0 0.0
    %101 = vmatprep.subr.mxu0 0.0
    %102 = vmatpush1.xpose.msra.mxu0 0.0
    %103 = vmatprep.subr.mxu0 0.0
    %104 = vmatpush1.xpose.msra.mxu0 0.0
    %105 = vmatprep.subr.mxu0 0.0
    %106 = vmatpush1.xpose.msra.mxu0 0.0
    %107 = vmatprep.subr.mxu0 0.0
    %108 = vmatpush1.xpose.msra.mxu0 0.0
    %109 = vmatprep.subr.mxu0 0.0
    %110 = vmatpush1.xpose.msra.mxu0 0.0
    %111 = vmatprep.subr.mxu0 0.0
    %112 = vmatpush1.xpose.msra.mxu0 0.0
    %113 = vmatprep.subr.mxu0 0.0
    %114 = vmatpush1.xpose.msra.mxu0 0.0
    %115 = vmatprep.subr.mxu0 0.0
    %116 = vmatpush1.xpose.msra.mxu0 0.0
    %117 = vmatprep.subr.mxu0 0.0
    %118 = vmatpush1.xpose.msra.mxu0 0.0
    %119 = vmatprep.mubr.f32.mxu0 0.0
    %120 = vmatmul.mubr.f32.gmra.mrb[0].mxu0 %v50
    %v121 = vpop.f32.mrb[0].mxu0
    %v122 = vadd.f32 %v46, %v121
    %v123 = vpop.f32.mrb[0].mxu0
    %124 = vdwg.mxu0
    %vm125 = vcmask 25600
    %126 = vst.msk [vmem:[#allocation7] sm:$0x3] %vm125, %v122
    %128 = vrot.lane.b32.xlu0 %v122, 4
    %v129 = vpop.permute.xlu0 %128
    %vm131 = vcmask 58400
    %132 = vst.msk [vmem:[#allocation7] sm:$0x3] %vm131, %v129
    %133 = vst.msk [vmem:[#allocation7 + $0x2] sm:$0x3] %vm125, %v122
    %134 = vst.msk [vmem:[#allocation7 + $0x2] sm:$0x3] %vm131, %v129
    // Predicated region
    $region22: #{tpu_custom_call.1} parent=1 // pred_check
      _
    $region23: #{tpu_custom_call.1} parent=1 // pred_check_branch
      %136 = sbr.rel (0) target = $region25
    $region24: #{tpu_custom_call.1} parent=1 // pred_region
      %s138 = ssub.s32 64, 64
      %139 = vsyncadd [#allocation4], %s138
      %s141 = sshll.u32 [#allocation7], 4
      %s142 = int_to_ptr.vmem [resolvable:$true] %s141
      %144 = dma.vmem_to_hbm [thread:$0]  %s142, 64, %s3, [#allocation4]
    $region25: #{tpu_custom_call.1} parent=1 // pred_fallthru
      _
    // Predicated region
    $region26: #{tpu_custom_call.1} parent=1 // pred_check
      _
    $region27: #{tpu_custom_call.1} parent=1 // pred_check_branch
      %146 = sbr.rel (0) target = $region29
    $region28: #{tpu_custom_call.1} parent=1 // pred_region
      %147 = dma.done [#allocation4], 64
    $region29: #{tpu_custom_call.1} parent=1 // pred_fallthru
      _
    %148 = vsyncpa [#allocation3], 1
    %149 = vsyncpa [#allocation6], 1
    %150 = vsyncpa [#allocation4], 1

</llo_original>
